<compile_context>
chip_gen: v5e
topology: v5e:2x2
jax: 0.10.0
libtpu: 0.0.40
codegen_flags: <defaults>
</compile_context>

<pallas_src>
import math

import jax
import jax.numpy as jnp
from jax import lax
from jax.experimental import pallas as pl
from jax.experimental.pallas import tpu as pltpu

_MASK_VALUE = -1e30


# ---------------------------------------------------------------------------
# Fused kernel: QKV projection -> per-head softmax -> per-head output Linear
# ---------------------------------------------------------------------------
def _make_fused_attn_kernel(n_head, d, bb, S, H, has_mask):
    def kernel(*refs):
        if has_mask:
            x_ref, wqkv_ref, wo_ref, bo_ref, bias_ref, out_ref = refs
        else:
            x_ref, wqkv_ref, wo_ref, bo_ref, out_ref = refs
            bias_ref = None

        x = x_ref[...]                                          # (bb*S, H) bf16

        # Single fused projection pass: (bb*S, H) @ (H, 3H) -> f32 accumulate.
        qkv = jnp.dot(x, wqkv_ref[...], preferred_element_type=jnp.float32)

        wo = wo_ref[...]                                        # (H, H) bf16
        bo = bo_ref[...]                                        # (1, H) f32

        for b in range(bb):                    # static unroll over batch block
            r0 = b * S
            bias = bias_ref[b] if has_mask else None            # (S, S) f32
            acc = None
            for h in range(n_head):            # static unroll over heads
                lo = h * d
                qh = qkv[r0:r0 + S, lo:lo + d].astype(jnp.bfloat16)          # (S, d)
                kh = qkv[r0:r0 + S, H + lo:H + lo + d].astype(jnp.bfloat16)  # (S, d)
                vh = qkv[r0:r0 + S, 2 * H + lo:2 * H + lo + d].astype(jnp.bfloat16)

                # scores = (q * scale) @ k.T  (NT matmul; scale baked into Wq).
                s = lax.dot_general(
                    qh, kh, (((1,), (1,)), ((), ())),
                    preferred_element_type=jnp.float32)                      # (S, S)
                if bias is not None:
                    s = s + bias                                 # additive mask bias

                m = jnp.max(s, axis=-1, keepdims=True)
                e = jnp.exp(s - m)
                p = e * pl.reciprocal(jnp.sum(e, axis=-1, keepdims=True),
                                      approx=True)
                head = jnp.dot(p.astype(jnp.bfloat16), vh,
                               preferred_element_type=jnp.float32)           # (S, d)

                # Output Linear fused per head: head @ out_w_t[lo:lo+d, :].
                contrib = jnp.dot(head.astype(jnp.bfloat16), wo[lo:lo + d, :],
                                  preferred_element_type=jnp.float32)        # (S, H)
                acc = contrib if acc is None else acc + contrib

            out_ref[r0:r0 + S, :] = (acc + bo).astype(out_ref.dtype)

    return kernel


# ---------------------------------------------------------------------------
# Wrapper: layout plumbing (QKV fuse, pre-transpose, bf16, mask bias) + call
# ---------------------------------------------------------------------------
def masked_self_attention(x, params, mask=None, *, batch_block=None):
    B, S, H = x.shape
    n_head, d, _ = params["W_query"].shape
    assert n_head * d == H

    # batch_block=B (default): all batches in one grid step (best on v5e/v6e).
    # batch_block=B//2: two "parallel" steps so v7x's 2 TensorCores both work.
    bb = B if batch_block is None else batch_block
    assert B % bb == 0
    scale = 1.0 / math.sqrt(d)

    # Heads stacked on rows, transposed -> contraction-ready; Q pre-scaled;
    # all three fused along lanes into a single (H, 3H) bf16 weight.
    wq_t = params["W_query"].reshape(H, H).T * scale
    wk_t = params["W_key"].reshape(H, H).T
    wv_t = params["W_value"].reshape(H, H).T
    wqkv_t = jnp.concatenate([wq_t, wk_t, wv_t], axis=1).astype(jnp.bfloat16)
    wo_t = params["out_w"].T.astype(jnp.bfloat16)               # (H, H)
    bo = params["out_b"].reshape(1, H).astype(jnp.float32)
    x_flat = x.reshape(B * S, H).astype(jnp.bfloat16)           # (B*S, H)

    has_mask = mask is not None
    operands = [x_flat, wqkv_t, wo_t, bo]
    in_specs = [
        pl.BlockSpec((bb * S, H), lambda i: (i, 0)),            # x rows per step
        pl.BlockSpec((H, 3 * H), lambda i: (0, 0)),             # fused W_qkv
        pl.BlockSpec((H, H), lambda i: (0, 0)),                 # out_w.T
        pl.BlockSpec((1, H), lambda i: (0, 0)),                 # out_b
    ]
    if has_mask:
        # PyTorch slices mask[:, :32, :32]; only consistent for S <= 32.
        assert S <= 32, "mask[:, :32, :32] semantics require S <= 32"
        bias = jnp.where(mask[:, :32, :32] == 0, _MASK_VALUE, 0.0)
        operands.append(bias.astype(jnp.float32))               # (B, S, S)
        in_specs.append(pl.BlockSpec((bb, S, S), lambda i: (i, 0, 0)))

    out = pl.pallas_call(
        _make_fused_attn_kernel(n_head, d, bb, S, H, has_mask),
        out_shape=jax.ShapeDtypeStruct((B * S, H), jnp.float32),
        grid_spec=pltpu.PrefetchScalarGridSpec(
            num_scalar_prefetch=0,
            grid=(B // bb,),
            in_specs=in_specs,
            out_specs=pl.BlockSpec((bb * S, H), lambda i: (i, 0)),
        ),
        compiler_params=pltpu.CompilerParams(
            dimension_semantics=("parallel",)),
    )(*operands)
    return out.reshape(B, S, H)                                 # free bitcast


# ---------------------------------------------------------------------------
# Params (mirrors the PyTorch module init) + pure-JAX reference
# ---------------------------------------------------------------------------
def init_params(key, hidden_size, n_head):
    d = hidden_size // n_head
    k1, k2, k3, k4, k5 = jax.random.split(key, 5)
    bound = 1.0 / math.sqrt(hidden_size)
    return {
        "W_query": jax.random.uniform(k1, (n_head, d, hidden_size), jnp.float32),
        "W_key":   jax.random.uniform(k2, (n_head, d, hidden_size), jnp.float32),
        "W_value": jax.random.uniform(k3, (n_head, d, hidden_size), jnp.float32),
        "out_w":   jax.random.uniform(k4, (hidden_size, hidden_size), jnp.float32,
                                      minval=-bound, maxval=bound),
        "out_b":   jax.random.uniform(k5, (hidden_size,), jnp.float32,
                                      minval=-bound, maxval=bound),
    }


def _b(t):
    # bf16 round-trip: mirrors the kernel's bf16 MXU inputs / f32 accumulation.
    return t.astype(jnp.bfloat16).astype(jnp.float32)


def reference_forward(x, params, mask=None):
    n_head, d, H = params["W_query"].shape
    xb = _b(x)
    heads = []
    for i in range(n_head):
        q = xb @ _b(params["W_query"][i].T)
        k = xb @ _b(params["W_key"][i].T)
        v = xb @ _b(params["W_value"][i].T)
        s = jnp.einsum("bqd,bkd->bqk", _b(q), _b(k)) / math.sqrt(d)
        if mask is not None:
            mm = mask[:, :32, :32]
            s = jnp.where(mm == 0, _MASK_VALUE, s)
        a = jax.nn.softmax(s, axis=-1)
        heads.append(jnp.einsum("bqk,bkd->bqd", _b(a), _b(v)))
    mh = jnp.concatenate(heads, axis=-1)
    return _b(mh) @ _b(params["out_w"].T) + params["out_b"]


if __name__ == "__main__":
    B, S, H, n_head = 2, 8, 32, 2
    key = jax.random.PRNGKey(0)
    kx, kp = jax.random.split(key)
    x = 0.3 * jax.random.normal(kx, (B, S, H), jnp.float32)
    params = init_params(kp, H, n_head)

    # mask=None path (single fused grid step)
    out = jax.block_until_ready(masked_self_attention(x, params))
    ref = reference_forward(x, params)
    assert out.shape == (B, S, H)
    assert jnp.allclose(out, ref, atol=2e-2, rtol=2e-2), \
        float(jnp.max(jnp.abs(out - ref)))

    # masked path (causal mask), exercises the masked_fill branch
    mask = jnp.tile(jnp.tril(jnp.ones((S, S), jnp.int32))[None], (B, 1, 1))
    out_m = jax.block_until_ready(masked_self_attention(x, params, mask))
    ref_m = reference_forward(x, params, mask)
    assert jnp.allclose(out_m, ref_m, atol=2e-2, rtol=2e-2), \
        float(jnp.max(jnp.abs(out_m - ref_m)))

    # v7x-style 2-way parallel split (one batch per grid step on each TC)
    out_s = jax.block_until_ready(
        masked_self_attention(x, params, mask, batch_block=1))
    assert jnp.allclose(out_s, ref_m, atol=2e-2, rtol=2e-2), \
        float(jnp.max(jnp.abs(out_s - ref_m)))

    print("KERNEL_OK")
</pallas_src>

<mosaic_0001>
module attributes {stable_mosaic.version = 11 : i64} {
  func.func @kernel(%arg0: i32, %arg1: memref<16x32xbf16, #tpu.memory_space<vmem>>, %arg2: memref<32x96xbf16, #tpu.memory_space<vmem>>, %arg3: memref<32x32xbf16, #tpu.memory_space<vmem>>, %arg4: memref<1x32xf32, #tpu.memory_space<vmem>>, %arg5: memref<16x32xf32, #tpu.memory_space<vmem>>) attributes {dimension_semantics = [#tpu.dimension_semantics<parallel>], iteration_bounds = array<i64: 1>, scalar_prefetch = 0 : i64, scratch_operands = 0 : i64, tpu.core_type = #tpu.core_type<tc>, window_params = [{transform_indices = @transform_0, window_bounds = array<i64: 16, 32>}, {pipeline_mode = #tpu.pipeline_mode<synchronous>, transform_indices = @transform_1, window_bounds = array<i64: 32, 96>}, {pipeline_mode = #tpu.pipeline_mode<synchronous>, transform_indices = @transform_2, window_bounds = array<i64: 32, 32>}, {pipeline_mode = #tpu.pipeline_mode<synchronous>, transform_indices = @transform_3, window_bounds = array<i64: 1, 32>}, {transform_indices = @transform_4, window_bounds = array<i64: 16, 32>}]} {
    %c0 = arith.constant 0 : index
    %c0_0 = arith.constant 0 : index
    %0 = vector.load %arg1[%c0, %c0_0] : memref<16x32xbf16, #tpu.memory_space<vmem>>, vector<16x32xbf16>
    %c0_1 = arith.constant 0 : index
    %c0_2 = arith.constant 0 : index
    %1 = vector.load %arg2[%c0_1, %c0_2] : memref<32x96xbf16, #tpu.memory_space<vmem>>, vector<32x96xbf16>
    %cst = arith.constant dense<0.000000e+00> : vector<16x96xf32>
    %2 = tpu.matmul %0, %1, %cst {dimension_numbers = #tpu.dot_dimension_numbers<[1], [0], [0], [1], [0, 0, 1, 1], [], []>} : vector<16x32xbf16>, vector<32x96xbf16>, vector<16x96xf32> -> vector<16x96xf32>
    %c0_3 = arith.constant 0 : index
    %c0_4 = arith.constant 0 : index
    %3 = vector.load %arg3[%c0_3, %c0_4] : memref<32x32xbf16, #tpu.memory_space<vmem>>, vector<32x32xbf16>
    %c0_5 = arith.constant 0 : index
    %c0_6 = arith.constant 0 : index
    %4 = vector.load %arg4[%c0_5, %c0_6] : memref<1x32xf32, #tpu.memory_space<vmem>>, vector<1x32xf32>
    %5 = vector.extract_strided_slice %2 {offsets = [0, 0], sizes = [8, 16], strides = [1, 1]} : vector<16x96xf32> to vector<8x16xf32>
    %6 = arith.truncf %5 : vector<8x16xf32> to vector<8x16xbf16>
    %7 = vector.extract_strided_slice %2 {offsets = [0, 32], sizes = [8, 16], strides = [1, 1]} : vector<16x96xf32> to vector<8x16xf32>
    %8 = arith.truncf %7 : vector<8x16xf32> to vector<8x16xbf16>
    %9 = vector.extract_strided_slice %2 {offsets = [0, 64], sizes = [8, 16], strides = [1, 1]} : vector<16x96xf32> to vector<8x16xf32>
    %10 = arith.truncf %9 : vector<8x16xf32> to vector<8x16xbf16>
    %cst_7 = arith.constant dense<0.000000e+00> : vector<8x8xf32>
    %11 = tpu.matmul %6, %8, %cst_7 {dimension_numbers = #tpu.dot_dimension_numbers<[1], [1], [0], [0], [0, 0, 1, 0], [], []>} : vector<8x16xbf16>, vector<8x16xbf16>, vector<8x8xf32> -> vector<8x8xf32>
    %cst_8 = arith.constant dense<0xFF800000> : vector<8xf32>
    %12 = vector.multi_reduction <maximumf>, %11, %cst_8 [1] : vector<8x8xf32> to vector<8xf32>
    %13 = vector.shape_cast %12 : vector<8xf32> to vector<8x1xf32>
    %14 = vector.broadcast %13 : vector<8x1xf32> to vector<8x8xf32>
    %15 = arith.subf %11, %14 : vector<8x8xf32>
    %16 = math.exp %15 : vector<8x8xf32>
    %cst_9 = arith.constant dense<0.000000e+00> : vector<8xf32>
    %17 = vector.multi_reduction <add>, %16, %cst_9 [1] : vector<8x8xf32> to vector<8xf32>
    %18 = vector.shape_cast %17 : vector<8xf32> to vector<8x1xf32>
    %19 = tpu.reciprocal %18 {approx = true} : vector<8x1xf32> -> vector<8x1xf32>
    %20 = vector.broadcast %19 : vector<8x1xf32> to vector<8x8xf32>
    %21 = arith.mulf %16, %20 : vector<8x8xf32>
    %22 = arith.truncf %21 : vector<8x8xf32> to vector<8x8xbf16>
    %cst_10 = arith.constant dense<0.000000e+00> : vector<8x16xf32>
    %23 = tpu.matmul %22, %10, %cst_10 {dimension_numbers = #tpu.dot_dimension_numbers<[1], [0], [0], [1], [0, 0, 1, 1], [], []>} : vector<8x8xbf16>, vector<8x16xbf16>, vector<8x16xf32> -> vector<8x16xf32>
    %24 = arith.truncf %23 : vector<8x16xf32> to vector<8x16xbf16>
    %25 = vector.extract_strided_slice %3 {offsets = [0, 0], sizes = [16, 32], strides = [1, 1]} : vector<32x32xbf16> to vector<16x32xbf16>
    %cst_11 = arith.constant dense<0.000000e+00> : vector<8x32xf32>
    %26 = tpu.matmul %24, %25, %cst_11 {dimension_numbers = #tpu.dot_dimension_numbers<[1], [0], [0], [1], [0, 0, 1, 1], [], []>} : vector<8x16xbf16>, vector<16x32xbf16>, vector<8x32xf32> -> vector<8x32xf32>
    %27 = vector.extract_strided_slice %2 {offsets = [0, 16], sizes = [8, 16], strides = [1, 1]} : vector<16x96xf32> to vector<8x16xf32>
    %28 = arith.truncf %27 : vector<8x16xf32> to vector<8x16xbf16>
    %29 = vector.extract_strided_slice %2 {offsets = [0, 48], sizes = [8, 16], strides = [1, 1]} : vector<16x96xf32> to vector<8x16xf32>
    %30 = arith.truncf %29 : vector<8x16xf32> to vector<8x16xbf16>
    %31 = vector.extract_strided_slice %2 {offsets = [0, 80], sizes = [8, 16], strides = [1, 1]} : vector<16x96xf32> to vector<8x16xf32>
    %32 = arith.truncf %31 : vector<8x16xf32> to vector<8x16xbf16>
    %cst_12 = arith.constant dense<0.000000e+00> : vector<8x8xf32>
    %33 = tpu.matmul %28, %30, %cst_12 {dimension_numbers = #tpu.dot_dimension_numbers<[1], [1], [0], [0], [0, 0, 1, 0], [], []>} : vector<8x16xbf16>, vector<8x16xbf16>, vector<8x8xf32> -> vector<8x8xf32>
    %cst_13 = arith.constant dense<0xFF800000> : vector<8xf32>
    %34 = vector.multi_reduction <maximumf>, %33, %cst_13 [1] : vector<8x8xf32> to vector<8xf32>
    %35 = vector.shape_cast %34 : vector<8xf32> to vector<8x1xf32>
    %36 = vector.broadcast %35 : vector<8x1xf32> to vector<8x8xf32>
    %37 = arith.subf %33, %36 : vector<8x8xf32>
    %38 = math.exp %37 : vector<8x8xf32>
    %cst_14 = arith.constant dense<0.000000e+00> : vector<8xf32>
    %39 = vector.multi_reduction <add>, %38, %cst_14 [1] : vector<8x8xf32> to vector<8xf32>
    %40 = vector.shape_cast %39 : vector<8xf32> to vector<8x1xf32>
    %41 = tpu.reciprocal %40 {approx = true} : vector<8x1xf32> -> vector<8x1xf32>
    %42 = vector.broadcast %41 : vector<8x1xf32> to vector<8x8xf32>
    %43 = arith.mulf %38, %42 : vector<8x8xf32>
    %44 = arith.truncf %43 : vector<8x8xf32> to vector<8x8xbf16>
    %cst_15 = arith.constant dense<0.000000e+00> : vector<8x16xf32>
    %45 = tpu.matmul %44, %32, %cst_15 {dimension_numbers = #tpu.dot_dimension_numbers<[1], [0], [0], [1], [0, 0, 1, 1], [], []>} : vector<8x8xbf16>, vector<8x16xbf16>, vector<8x16xf32> -> vector<8x16xf32>
    %46 = arith.truncf %45 : vector<8x16xf32> to vector<8x16xbf16>
    %47 = vector.extract_strided_slice %3 {offsets = [16, 0], sizes = [16, 32], strides = [1, 1]} : vector<32x32xbf16> to vector<16x32xbf16>
    %cst_16 = arith.constant dense<0.000000e+00> : vector<8x32xf32>
    %48 = tpu.matmul %46, %47, %cst_16 {dimension_numbers = #tpu.dot_dimension_numbers<[1], [0], [0], [1], [0, 0, 1, 1], [], []>} : vector<8x16xbf16>, vector<16x32xbf16>, vector<8x32xf32> -> vector<8x32xf32>
    %49 = arith.addf %26, %48 : vector<8x32xf32>
    %50 = vector.broadcast %4 : vector<1x32xf32> to vector<8x32xf32>
    %51 = arith.addf %49, %50 : vector<8x32xf32>
    %c0_17 = arith.constant 0 : index
    %c0_18 = arith.constant 0 : index
    %52 = vector.load %arg5[%c0_17, %c0_18] : memref<16x32xf32, #tpu.memory_space<vmem>>, vector<8x32xf32>
    tpu.vector_store %arg5[%c0_17, %c0_18], %51 {strides = array<i32>} : memref<16x32xf32, #tpu.memory_space<vmem>>, vector<8x32xf32>,
    %53 = vector.extract_strided_slice %2 {offsets = [8, 0], sizes = [8, 16], strides = [1, 1]} : vector<16x96xf32> to vector<8x16xf32>
    %54 = arith.truncf %53 : vector<8x16xf32> to vector<8x16xbf16>
    %55 = vector.extract_strided_slice %2 {offsets = [8, 32], sizes = [8, 16], strides = [1, 1]} : vector<16x96xf32> to vector<8x16xf32>
    %56 = arith.truncf %55 : vector<8x16xf32> to vector<8x16xbf16>
    %57 = vector.extract_strided_slice %2 {offsets = [8, 64], sizes = [8, 16], strides = [1, 1]} : vector<16x96xf32> to vector<8x16xf32>
    %58 = arith.truncf %57 : vector<8x16xf32> to vector<8x16xbf16>
    %cst_19 = arith.constant dense<0.000000e+00> : vector<8x8xf32>
    %59 = tpu.matmul %54, %56, %cst_19 {dimension_numbers = #tpu.dot_dimension_numbers<[1], [1], [0], [0], [0, 0, 1, 0], [], []>} : vector<8x16xbf16>, vector<8x16xbf16>, vector<8x8xf32> -> vector<8x8xf32>
    %cst_20 = arith.constant dense<0xFF800000> : vector<8xf32>
    %60 = vector.multi_reduction <maximumf>, %59, %cst_20 [1] : vector<8x8xf32> to vector<8xf32>
    %61 = vector.shape_cast %60 : vector<8xf32> to vector<8x1xf32>
    %62 = vector.broadcast %61 : vector<8x1xf32> to vector<8x8xf32>
    %63 = arith.subf %59, %62 : vector<8x8xf32>
    %64 = math.exp %63 : vector<8x8xf32>
    %cst_21 = arith.constant dense<0.000000e+00> : vector<8xf32>
    %65 = vector.multi_reduction <add>, %64, %cst_21 [1] : vector<8x8xf32> to vector<8xf32>
    %66 = vector.shape_cast %65 : vector<8xf32> to vector<8x1xf32>
    %67 = tpu.reciprocal %66 {approx = true} : vector<8x1xf32> -> vector<8x1xf32>
    %68 = vector.broadcast %67 : vector<8x1xf32> to vector<8x8xf32>
    %69 = arith.mulf %64, %68 : vector<8x8xf32>
    %70 = arith.truncf %69 : vector<8x8xf32> to vector<8x8xbf16>
    %cst_22 = arith.constant dense<0.000000e+00> : vector<8x16xf32>
    %71 = tpu.matmul %70, %58, %cst_22 {dimension_numbers = #tpu.dot_dimension_numbers<[1], [0], [0], [1], [0, 0, 1, 1], [], []>} : vector<8x8xbf16>, vector<8x16xbf16>, vector<8x16xf32> -> vector<8x16xf32>
    %72 = arith.truncf %71 : vector<8x16xf32> to vector<8x16xbf16>
    %73 = vector.extract_strided_slice %3 {offsets = [0, 0], sizes = [16, 32], strides = [1, 1]} : vector<32x32xbf16> to vector<16x32xbf16>
    %cst_23 = arith.constant dense<0.000000e+00> : vector<8x32xf32>
    %74 = tpu.matmul %72, %73, %cst_23 {dimension_numbers = #tpu.dot_dimension_numbers<[1], [0], [0], [1], [0, 0, 1, 1], [], []>} : vector<8x16xbf16>, vector<16x32xbf16>, vector<8x32xf32> -> vector<8x32xf32>
    %75 = vector.extract_strided_slice %2 {offsets = [8, 16], sizes = [8, 16], strides = [1, 1]} : vector<16x96xf32> to vector<8x16xf32>
    %76 = arith.truncf %75 : vector<8x16xf32> to vector<8x16xbf16>
    %77 = vector.extract_strided_slice %2 {offsets = [8, 48], sizes = [8, 16], strides = [1, 1]} : vector<16x96xf32> to vector<8x16xf32>
    %78 = arith.truncf %77 : vector<8x16xf32> to vector<8x16xbf16>
    %79 = vector.extract_strided_slice %2 {offsets = [8, 80], sizes = [8, 16], strides = [1, 1]} : vector<16x96xf32> to vector<8x16xf32>
    %80 = arith.truncf %79 : vector<8x16xf32> to vector<8x16xbf16>
    %cst_24 = arith.constant dense<0.000000e+00> : vector<8x8xf32>
    %81 = tpu.matmul %76, %78, %cst_24 {dimension_numbers = #tpu.dot_dimension_numbers<[1], [1], [0], [0], [0, 0, 1, 0], [], []>} : vector<8x16xbf16>, vector<8x16xbf16>, vector<8x8xf32> -> vector<8x8xf32>
    %cst_25 = arith.constant dense<0xFF800000> : vector<8xf32>
    %82 = vector.multi_reduction <maximumf>, %81, %cst_25 [1] : vector<8x8xf32> to vector<8xf32>
    %83 = vector.shape_cast %82 : vector<8xf32> to vector<8x1xf32>
    %84 = vector.broadcast %83 : vector<8x1xf32> to vector<8x8xf32>
    %85 = arith.subf %81, %84 : vector<8x8xf32>
    %86 = math.exp %85 : vector<8x8xf32>
    %cst_26 = arith.constant dense<0.000000e+00> : vector<8xf32>
    %87 = vector.multi_reduction <add>, %86, %cst_26 [1] : vector<8x8xf32> to vector<8xf32>
    %88 = vector.shape_cast %87 : vector<8xf32> to vector<8x1xf32>
    %89 = tpu.reciprocal %88 {approx = true} : vector<8x1xf32> -> vector<8x1xf32>
    %90 = vector.broadcast %89 : vector<8x1xf32> to vector<8x8xf32>
    %91 = arith.mulf %86, %90 : vector<8x8xf32>
    %92 = arith.truncf %91 : vector<8x8xf32> to vector<8x8xbf16>
    %cst_27 = arith.constant dense<0.000000e+00> : vector<8x16xf32>
    %93 = tpu.matmul %92, %80, %cst_27 {dimension_numbers = #tpu.dot_dimension_numbers<[1], [0], [0], [1], [0, 0, 1, 1], [], []>} : vector<8x8xbf16>, vector<8x16xbf16>, vector<8x16xf32> -> vector<8x16xf32>
    %94 = arith.truncf %93 : vector<8x16xf32> to vector<8x16xbf16>
    %95 = vector.extract_strided_slice %3 {offsets = [16, 0], sizes = [16, 32], strides = [1, 1]} : vector<32x32xbf16> to vector<16x32xbf16>
    %cst_28 = arith.constant dense<0.000000e+00> : vector<8x32xf32>
    %96 = tpu.matmul %94, %95, %cst_28 {dimension_numbers = #tpu.dot_dimension_numbers<[1], [0], [0], [1], [0, 0, 1, 1], [], []>} : vector<8x16xbf16>, vector<16x32xbf16>, vector<8x32xf32> -> vector<8x32xf32>
    %97 = arith.addf %74, %96 : vector<8x32xf32>
    %98 = vector.broadcast %4 : vector<1x32xf32> to vector<8x32xf32>
    %99 = arith.addf %97, %98 : vector<8x32xf32>
    %c8 = arith.constant 8 : index
    %c0_29 = arith.constant 0 : index
    %100 = vector.load %arg5[%c8, %c0_29] : memref<16x32xf32, #tpu.memory_space<vmem>>, vector<8x32xf32>
    tpu.vector_store %arg5[%c8, %c0_29], %99 {strides = array<i32>} : memref<16x32xf32, #tpu.memory_space<vmem>>, vector<8x32xf32>,
    return
  }
  func.func @transform_0(%arg0: i32) -> (i32, i32) {
    %c0_i32 = arith.constant 0 : i32
    %c0_i32_0 = arith.constant 0 : i32
    return %arg0, %c0_i32 : i32, i32
  }
  func.func @transform_1(%arg0: i32) -> (i32, i32) {
    %c0_i32 = arith.constant 0 : i32
    %c0_i32_0 = arith.constant 0 : i32
    %c0_i32_1 = arith.constant 0 : i32
    return %c0_i32, %c0_i32_0 : i32, i32
  }
  func.func @transform_2(%arg0: i32) -> (i32, i32) {
    %c0_i32 = arith.constant 0 : i32
    %c0_i32_0 = arith.constant 0 : i32
    %c0_i32_1 = arith.constant 0 : i32
    return %c0_i32, %c0_i32_0 : i32, i32
  }
  func.func @transform_3(%arg0: i32) -> (i32, i32) {
    %c0_i32 = arith.constant 0 : i32
    %c0_i32_0 = arith.constant 0 : i32
    %c0_i32_1 = arith.constant 0 : i32
    return %c0_i32, %c0_i32_0 : i32, i32
  }
  func.func @transform_4(%arg0: i32) -> (i32, i32) {
    %c0_i32 = arith.constant 0 : i32
    %c0_i32_0 = arith.constant 0 : i32
    return %arg0, %c0_i32 : i32, i32
  }
}

</mosaic_0001>

<llo_original>
// kernel: tpu_custom_call.1
$region0: #{tpu_custom_call.1}
  #allocation0 [shape = 'u32[]', space=smem, size = 0x4, offset = 0x4, fixed_abs, tag = 'smem constant byte address 0x4 - core index']
  #allocation1 [shape = 'u32[72,128]{1,0:T(1,128)}', space=vmem, size = 0x9000, scoped, tag = 'internal scratch']
  %s0 = inlined_call_operand.hbm [shape: bf16[16,32], index: 0, kind: input, shape index: {}]
  %s1 = inlined_call_operand.hbm [shape: bf16[32,96], index: 1, kind: input, shape index: {}]
  %s2 = inlined_call_operand.hbm [shape: bf16[32,32], index: 2, kind: input, shape index: {}]
  %s3 = inlined_call_operand.vmem [shape: f32[1,32], index: 3, kind: input, shape index: {}]
  %s4 = inlined_call_operand.hbm [shape: f32[16,32], index: 4, kind: output, shape index: {}]
  %s5 = sld [smem:[#allocation0]]
  $region38: #{tpu_custom_call.1} parent=0
    _
  %s7 = ssub.s32 1, %s5
  %s8 = scalar_select 0, %s7, %s5
  $region1: #{tpu_custom_call.1} parent=0
    #allocation2 [shape = 'u8[4096]{0}', space=vmem, size = 0x1000, scoped, tag = 'input window, operand 0, single buffered']
    #allocation3 [shape = 's32[1]{0}', space=sflag, size = 0x4, scoped, tag = 'scoped memory for tpu_custom_call.1']
    #allocation4 [shape = 's32[1]{0}', space=sflag, size = 0x4, scoped, tag = 'scoped memory for tpu_custom_call.1']
    #allocation5 [shape = 'u8[8192]{0}', space=vmem, size = 0x2000, scoped, tag = 'input window, operand 1, single buffered']
    #allocation6 [shape = 's32[1]{0}', space=sflag, size = 0x4, scoped, tag = 'scoped memory for tpu_custom_call.1']
    #allocation7 [shape = 'u8[8192]{0}', space=vmem, size = 0x2000, scoped, tag = 'input window, operand 2, single buffered']
    #allocation8 [shape = 'u8[8192]{0}', space=vmem, size = 0x2000, scoped, tag = 'output window, operand 0, single buffered']
    %9 = vsyncpa [#allocation3], 0
    %10 = vsyncpa [#allocation6], 0
    %11 = vsyncpa [#allocation4], 0
    // Predicated region
    $region2: #{tpu_custom_call.1} parent=1 // pred_check
      _
    $region3: #{tpu_custom_call.1} parent=1 // pred_check_branch
      %13 = sbr.rel (0) target = $region5
    $region4: #{tpu_custom_call.1} parent=1 // pred_region
      %15 = vsyncadd [#allocation3], 0
      %s16 = sshll.u32 %s0, 4
      %s17 = int_to_ptr.hbm [resolvable:$true] %s16
      %s18 = sshll.u32 [#allocation2], 4
      %s19 = int_to_ptr.vmem [resolvable:$true] %s18
      %24 = dma.hbm_to_vmem [thread:$0]  %s17, 128, %s19, [#allocation3], 64, 64, 4
    $region5: #{tpu_custom_call.1} parent=1 // pred_fallthru
      _
    // Predicated region
    $region6: #{tpu_custom_call.1} parent=1 // pred_check
      _
    $region7: #{tpu_custom_call.1} parent=1 // pred_check_branch
      %26 = sbr.rel (0) target = $region9
    $region8: #{tpu_custom_call.1} parent=1 // pred_region
      %28 = vsyncadd [#allocation6], 0
      %s29 = sshll.u32 %s1, 4
      %s30 = int_to_ptr.hbm [resolvable:$true] %s29
      %s31 = sshll.u32 [#allocation5], 4
      %s32 = int_to_ptr.vmem [resolvable:$true] %s31
      %37 = dma.hbm_to_vmem [thread:$0]  %s30, 256, %s32, [#allocation6], 64, 64, 4
    $region9: #{tpu_custom_call.1} parent=1 // pred_fallthru
      _
    // Predicated region
    $region10: #{tpu_custom_call.1} parent=1 // pred_check
      _
    $region11: #{tpu_custom_call.1} parent=1 // pred_check_branch
      %39 = sbr.rel (0) target = $region13
    $region12: #{tpu_custom_call.1} parent=1 // pred_region
      %41 = vsyncadd [#allocation6], 0
      %s42 = sshll.u32 %s2, 4
      %s43 = int_to_ptr.hbm [resolvable:$true] %s42
      %s44 = sshll.u32 [#allocation7], 4
      %s45 = int_to_ptr.vmem [resolvable:$true] %s44
      %50 = dma.hbm_to_vmem [thread:$0]  %s43, 256, %s45, [#allocation6], 64, 64, 4
    $region13: #{tpu_custom_call.1} parent=1 // pred_fallthru
      _
    // Predicated region
    $region14: #{tpu_custom_call.1} parent=1 // pred_check
      _
    $region15: #{tpu_custom_call.1} parent=1 // pred_check_branch
      %52 = sbr.rel (0) target = $region17
    $region16: #{tpu_custom_call.1} parent=1 // pred_region
      _
    $region17: #{tpu_custom_call.1} parent=1 // pred_fallthru
      _
    // Predicated region
    $region18: #{tpu_custom_call.1} parent=1 // pred_check
      _
    $region19: #{tpu_custom_call.1} parent=1 // pred_check_branch
      %54 = sbr.rel (0) target = $region21
    $region20: #{tpu_custom_call.1} parent=1 // pred_region
      %56 = dma.done [#allocation3], 128
    $region21: #{tpu_custom_call.1} parent=1 // pred_fallthru
      _
    // Predicated region
    $region22: #{tpu_custom_call.1} parent=1 // pred_check
      _
    $region23: #{tpu_custom_call.1} parent=1 // pred_check_branch
      %58 = sbr.rel (0) target = $region25
    $region24: #{tpu_custom_call.1} parent=1 // pred_region
      %60 = dma.done [#allocation6], 256
    $region25: #{tpu_custom_call.1} parent=1 // pred_fallthru
      _
    // Predicated region
    $region26: #{tpu_custom_call.1} parent=1 // pred_check
      _
    $region27: #{tpu_custom_call.1} parent=1 // pred_check_branch
      %62 = sbr.rel (0) target = $region29
    $region28: #{tpu_custom_call.1} parent=1 // pred_region
      %64 = dma.done [#allocation6], 256
    $region29: #{tpu_custom_call.1} parent=1 // pred_fallthru
      _
    %v66 = vld [vmem:[#allocation2] sm:$0xf]
    %v67 = vld [vmem:[#allocation2 + $0x4] sm:$0xf]
    %v68 = vld [vmem:[#allocation5] sm:$0xf]
    %v69 = vld [vmem:[#allocation5 + $0x4] sm:$0xf]
    %v70 = vld [vmem:[#allocation5 + $0x8] sm:$0xf]
    %v71 = vld [vmem:[#allocation5 + $0xc] sm:$0xf]
    %v74 = vunpack.c.l.b16 %v66
    %v75 = vunpack.c.l.b16 %v67
    %v76 = vpack.c.b16 %v75, %v74
    %v81 = vunpack.c.l.b16 %v68
    %v82 = vunpack.c.l.b16 %v69
    %v83 = vunpack.c.l.b16 %v70
    %v84 = vunpack.c.l.b16 %v71
    %v85 = vpack.c.b16 %v82, %v81
    %v86 = vpack.c.b16 %v84, %v83
    %vm89 = vcmask 261120
    %v91 = vsel %vm89, %v76, 0
    %93 = vmatpush.bf16.msra.mxu0 0
    %94 = vmatpush.bf16.msra.mxu0 0
    %95 = vmatpush.bf16.msra.mxu0 0
    %96 = vmatpush.bf16.msra.mxu0 0
    %97 = vmatpush.bf16.msra.mxu0 0
    %98 = vmatpush.bf16.msra.mxu0 0
    %99 = vmatpush.bf16.msra.mxu0 %v86
    %100 = vmatpush.bf16.msra.mxu0 %v85
    %101 = vmatmul.bf16.gmra.mxu0 %v91
    %v102 = vpop.f32.mrf.mxu0
    %v103 = vadd.f32 0.0, %v102
    %v104 = vpop.f32.mrf.mxu0
    %v105 = vadd.f32 0.0, %v104
    %106 = vdwg.mxu0
    %v107 = vld [vmem:[#allocation7] sm:$0xf]
    %v108 = vld [vmem:[#allocation7 + $0x4] sm:$0xf]
    %v109 = vld [vmem:[#allocation7 + $0x8] sm:$0xf]
    %v110 = vld [vmem:[#allocation7 + $0xc] sm:$0xf]
    %v111 = vld [vmem:[%s3] sm:$0x1]
    %v112 = vpack.c.bf16 %v103, %v103
    %114 = vrot.lane.b32.xlu0 %v112, 96
    %v115 = vpop.permute.xlu0 %114
    %vm116 = vcmask 130048
    %v118 = vsel %vm116, %v112, 0
    %v121 = vsel %vm116, %v115, 0
    %123 = vmatpush.bf16.xpose.msra.mxu0 0
    %124 = vmatpush.bf16.xpose.msra.mxu0 0
    %125 = vmatpush.bf16.xpose.msra.mxu0 0
    %126 = vmatpush.bf16.xpose.msra.mxu0 0
    %127 = vmatpush.bf16.xpose.msra.mxu0 0
    %128 = vmatpush.bf16.xpose.msra.mxu0 0
    %129 = vmatpush.bf16.xpose.msra.mxu0 0
    %130 = vmatpush.bf16.xpose.msra.mxu0 %v121
    %131 = vmatmul.bf16.gmra.mxu0 %v118
    %v132 = vpop.f32.mrf.mxu0
    %v133 = vadd.f32 0.0, %v132
    %v134 = vpop.f32.mrf.mxu0
    %135 = vdwg.mxu0
    %vm136 = vcmask 64512
    %v137 = vsel %vm136, %v133, -inf
    %138 = vmax.xlane.f32.xlu0 %v137
    %v139 = vpop.xlane.xlu0 %138
    %v140 = vsub.f32 %v133, %v139
    %v141 = vmul.f32 %v140, 1.442695
    %v142 = vpow.pop %v141
    %v143 = vsel %vm136, %v142, 0.0
    %144 = vadd.xlane.f32.xlu0 %v143
    %v145 = vpop.xlane.xlu0 %144
    %v146 = vrcp.pop %v145
    %v147 = vmul.f32 %v142, %v146
    %v148 = vpack.c.bf16 %v147, %v147
    %149 = vrot.lane.b32.xlu0 %v112, 64
    %v150 = vpop.permute.xlu0 %149
    %v152 = vsel %vm136, %v148, 0
    %vm154 = vcmask 1043456
    %v156 = vsel %vm154, %v150, 0
    %158 = vmatpush.bf16.msra.mxu0 0
    %159 = vmatpush.bf16.msra.mxu0 0
    %160 = vmatpush.bf16.msra.mxu0 0
    %161 = vmatpush.bf16.msra.mxu0 0
    %162 = vmatpush.bf16.msra.mxu0 0
    %163 = vmatpush.bf16.msra.mxu0 0
    %164 = vmatpush.bf16.msra.mxu0 0
    %165 = vmatpush.bf16.msra.mxu0 %v156
    %166 = vmatmul.bf16.gmra.mxu0 %v152
    %v167 = vpop.f32.mrf.mxu0
    %v168 = vadd.f32 0.0, %v167
    %v169 = vpop.f32.mrf.mxu0
    %170 = vdwg.mxu0
    %v171 = vpack.c.bf16 %v168, %v168
    %172 = vrot.lane.b32.xlu0 %v112, 112
    %v173 = vpop.permute.xlu0 %172
    %174 = vrot.lane.b32.xlu0 %v112, 80
    %v175 = vpop.permute.xlu0 %174
    %v177 = vsel %vm116, %v173, 0
    %v180 = vsel %vm116, %v175, 0
    %182 = vmatpush.bf16.xpose.msra.mxu0 0
    %183 = vmatpush.bf16.xpose.msra.mxu0 0
    %184 = vmatpush.bf16.xpose.msra.mxu0 0
    %185 = vmatpush.bf16.xpose.msra.mxu0 0
    %186 = vmatpush.bf16.xpose.msra.mxu0 0
    %187 = vmatpush.bf16.xpose.msra.mxu0 0
    %188 = vmatpush.bf16.xpose.msra.mxu0 0
    %189 = vmatpush.bf16.xpose.msra.mxu0 %v180
    %190 = vmatmul.bf16.gmra.mxu0 %v177
    %v191 = vpop.f32.mrf.mxu0
    %v192 = vadd.f32 0.0, %v191
    %v193 = vpop.f32.mrf.mxu0
    %194 = vdwg.mxu0
    %v195 = vsel %vm136, %v192, -inf
    %196 = vmax.xlane.f32.xlu0 %v195
    %v197 = vpop.xlane.xlu0 %196
    %v198 = vsub.f32 %v192, %v197
    %v199 = vmul.f32 %v198, 1.442695
    %v200 = vpow.pop %v199
    %v201 = vsel %vm136, %v200, 0.0
    %202 = vadd.xlane.f32.xlu0 %v201
    %v203 = vpop.xlane.xlu0 %202
    %v204 = vrcp.pop %v203
    %v205 = vmul.f32 %v200, %v204
    %v206 = vpack.c.bf16 %v205, %v205
    %207 = vrot.lane.b32.xlu0 %v112, 48
    %v208 = vpop.permute.xlu0 %207
    %v210 = vsel %vm136, %v206, 0
    %v213 = vsel %vm154, %v208, 0
    %215 = vmatpush.bf16.msra.mxu0 0
    %216 = vmatpush.bf16.msra.mxu0 0
    %217 = vmatpush.bf16.msra.mxu0 0
    %218 = vmatpush.bf16.msra.mxu0 0
    %219 = vmatpush.bf16.msra.mxu0 0
    %220 = vmatpush.bf16.msra.mxu0 0
    %221 = vmatpush.bf16.msra.mxu0 0
    %222 = vmatpush.bf16.msra.mxu0 %v213
    %223 = vmatmul.bf16.gmra.mxu0 %v210
    %v224 = vpop.f32.mrf.mxu0
    %v225 = vadd.f32 0.0, %v224
    %v226 = vpop.f32.mrf.mxu0
    %227 = vdwg.mxu0
    %v228 = vpack.c.bf16 %v225, %v225
    %v231 = vunpack.c.l.b16 %v109
    %v232 = vunpack.c.l.b16 %v110
    %v233 = vpack.c.b16 %v232, %v231
    %v236 = vsel %vm116, %v228, 0
    %238 = vmatpush.bf16.msra.mxu0 0
    %239 = vmatpush.bf16.msra.mxu0 0
    %240 = vmatpush.bf16.msra.mxu0 0
    %241 = vmatpush.bf16.msra.mxu0 0
    %242 = vmatpush.bf16.msra.mxu0 0
    %243 = vmatpush.bf16.msra.mxu0 0
    %244 = vmatpush.bf16.msra.mxu0 0
    %245 = vmatpush.bf16.msra.mxu0 %v233
    %246 = vmatmul.bf16.gmra.mxu0 %v236
    %v247 = vpop.f32.mrf.mxu0
    %v248 = vadd.f32 0.0, %v247
    %v249 = vpop.f32.mrf.mxu0
    %250 = vdwg.mxu0
    %v253 = vunpack.c.l.b16 %v107
    %v254 = vunpack.c.l.b16 %v108
    %v255 = vpack.c.b16 %v254, %v253
    %v258 = vsel %vm116, %v171, 0
    %260 = vmatpush.bf16.msra.mxu0 0
    %261 = vmatpush.bf16.msra.mxu0 0
    %262 = vmatpush.bf16.msra.mxu0 0
    %263 = vmatpush.bf16.msra.mxu0 0
    %264 = vmatpush.bf16.msra.mxu0 0
    %265 = vmatpush.bf16.msra.mxu0 0
    %266 = vmatpush.bf16.msra.mxu0 0
    %267 = vmatpush.bf16.msra.mxu0 %v255
    %268 = vmatmul.bf16.gmra.mxu0 %v258
    %v269 = vpop.f32.mrf.mxu0
    %v270 = vadd.f32 %v248, %v269
    %v271 = vpop.f32.mrf.mxu0
    %272 = vdwg.mxu0
    %v274 = vperm.slane %v111, 0
    %v276 = vadd.f32 %v270, %v274
    %277 = vst.msk [vmem:[#allocation8] sm:$0xff] %vm89, %v276
    %v278 = vpack.c.bf16 %v105, %v105
    %280 = vrot.lane.b32.xlu0 %v278, 96
    %v281 = vpop.permute.xlu0 %280
    %v283 = vsel %vm116, %v278, 0
    %v286 = vsel %vm116, %v281, 0
    %288 = vmatpush.bf16.xpose.msra.mxu0 0
    %289 = vmatpush.bf16.xpose.msra.mxu0 0
    %290 = vmatpush.bf16.xpose.msra.mxu0 0
    %291 = vmatpush.bf16.xpose.msra.mxu0 0
    %292 = vmatpush.bf16.xpose.msra.mxu0 0
    %293 = vmatpush.bf16.xpose.msra.mxu0 0
    %294 = vmatpush.bf16.xpose.msra.mxu0 0
    %295 = vmatpush.bf16.xpose.msra.mxu0 %v286
    %296 = vmatmul.bf16.gmra.mxu0 %v283
    %v297 = vpop.f32.mrf.mxu0
    %v298 = vadd.f32 0.0, %v297
    %v299 = vpop.f32.mrf.mxu0
    %300 = vdwg.mxu0
    %v301 = vsel %vm136, %v298, -inf
    %302 = vmax.xlane.f32.xlu0 %v301
    %v303 = vpop.xlane.xlu0 %302
    %v304 = vsub.f32 %v298, %v303
    %v305 = vmul.f32 %v304, 1.442695
    %v306 = vpow.pop %v305
    %v307 = vsel %vm136, %v306, 0.0
    %308 = vadd.xlane.f32.xlu0 %v307
    %v309 = vpop.xlane.xlu0 %308
    %v310 = vrcp.pop %v309
    %v311 = vmul.f32 %v306, %v310
    %v312 = vpack.c.bf16 %v311, %v311
    %313 = vrot.lane.b32.xlu0 %v278, 64
    %v314 = vpop.permute.xlu0 %313
    %v316 = vsel %vm136, %v312, 0
    %v319 = vsel %vm154, %v314, 0
    %321 = vmatpush.bf16.msra.mxu0 0
    %322 = vmatpush.bf16.msra.mxu0 0
    %323 = vmatpush.bf16.msra.mxu0 0
    %324 = vmatpush.bf16.msra.mxu0 0
    %325 = vmatpush.bf16.msra.mxu0 0
    %326 = vmatpush.bf16.msra.mxu0 0
    %327 = vmatpush.bf16.msra.mxu0 0
    %328 = vmatpush.bf16.msra.mxu0 %v319
    %329 = vmatmul.bf16.gmra.mxu0 %v316
    %v330 = vpop.f32.mrf.mxu0
    %v331 = vadd.f32 0.0, %v330
    %v332 = vpop.f32.mrf.mxu0
    %333 = vdwg.mxu0
    %v334 = vpack.c.bf16 %v331, %v331
    %335 = vrot.lane.b32.xlu0 %v278, 112
    %v336 = vpop.permute.xlu0 %335
    %337 = vrot.lane.b32.xlu0 %v278, 80
    %v338 = vpop.permute.xlu0 %337
    %v340 = vsel %vm116, %v336, 0
    %v343 = vsel %vm116, %v338, 0
    %345 = vmatpush.bf16.xpose.msra.mxu0 0
    %346 = vmatpush.bf16.xpose.msra.mxu0 0
    %347 = vmatpush.bf16.xpose.msra.mxu0 0
    %348 = vmatpush.bf16.xpose.msra.mxu0 0
    %349 = vmatpush.bf16.xpose.msra.mxu0 0
    %350 = vmatpush.bf16.xpose.msra.mxu0 0
    %351 = vmatpush.bf16.xpose.msra.mxu0 0
    %352 = vmatpush.bf16.xpose.msra.mxu0 %v343
    %353 = vmatmul.bf16.gmra.mxu0 %v340
    %v354 = vpop.f32.mrf.mxu0
    %v355 = vadd.f32 0.0, %v354
    %v356 = vpop.f32.mrf.mxu0
    %357 = vdwg.mxu0
    %v358 = vsel %vm136, %v355, -inf
    %359 = vmax.xlane.f32.xlu0 %v358
    %v360 = vpop.xlane.xlu0 %359
    %v361 = vsub.f32 %v355, %v360
    %v362 = vmul.f32 %v361, 1.442695
    %v363 = vpow.pop %v362
    %v364 = vsel %vm136, %v363, 0.0
    %365 = vadd.xlane.f32.xlu0 %v364
    %v366 = vpop.xlane.xlu0 %365
    %v367 = vrcp.pop %v366
    %v368 = vmul.f32 %v363, %v367
    %v369 = vpack.c.bf16 %v368, %v368
    %370 = vrot.lane.b32.xlu0 %v278, 48
    %v371 = vpop.permute.xlu0 %370
    %v373 = vsel %vm136, %v369, 0
    %v376 = vsel %vm154, %v371, 0
    %378 = vmatpush.bf16.msra.mxu0 0
    %379 = vmatpush.bf16.msra.mxu0 0
    %380 = vmatpush.bf16.msra.mxu0 0
    %381 = vmatpush.bf16.msra.mxu0 0
    %382 = vmatpush.bf16.msra.mxu0 0
    %383 = vmatpush.bf16.msra.mxu0 0
    %384 = vmatpush.bf16.msra.mxu0 0
    %385 = vmatpush.bf16.msra.mxu0 %v376
    %386 = vmatmul.bf16.gmra.mxu0 %v373
    %v387 = vpop.f32.mrf.mxu0
    %v388 = vadd.f32 0.0, %v387
    %v389 = vpop.f32.mrf.mxu0
    %390 = vdwg.mxu0
    %v391 = vpack.c.bf16 %v388, %v388
    %v393 = vsel %vm116, %v391, 0
    %395 = vmatpush.bf16.msra.mxu0 0
    %396 = vmatpush.bf16.msra.mxu0 0
    %397 = vmatpush.bf16.msra.mxu0 0
    %398 = vmatpush.bf16.msra.mxu0 0
    %399 = vmatpush.bf16.msra.mxu0 0
    %400 = vmatpush.bf16.msra.mxu0 0
    %401 = vmatpush.bf16.msra.mxu0 0
    %402 = vmatpush.bf16.msra.mxu0 %v233
    %403 = vmatmul.bf16.gmra.mxu0 %v393
    %v404 = vpop.f32.mrf.mxu0
    %v405 = vadd.f32 0.0, %v404
    %v406 = vpop.f32.mrf.mxu0
    %407 = vdwg.mxu0
    %v409 = vsel %vm116, %v334, 0
    %411 = vmatpush.bf16.msra.mxu0 0
    %412 = vmatpush.bf16.msra.mxu0 0
    %413 = vmatpush.bf16.msra.mxu0 0
    %414 = vmatpush.bf16.msra.mxu0 0
    %415 = vmatpush.bf16.msra.mxu0 0
    %416 = vmatpush.bf16.msra.mxu0 0
    %417 = vmatpush.bf16.msra.mxu0 0
    %418 = vmatpush.bf16.msra.mxu0 %v255
    %419 = vmatmul.bf16.gmra.mxu0 %v409
    %v420 = vpop.f32.mrf.mxu0
    %v421 = vadd.f32 %v405, %v420
    %v422 = vpop.f32.mrf.mxu0
    %423 = vdwg.mxu0
    %v424 = vadd.f32 %v421, %v274
    %425 = vst.msk [vmem:[#allocation8 + $0x8] sm:$0xff] %vm89, %v424
    // Predicated region
    $region30: #{tpu_custom_call.1} parent=1 // pred_check
      _
    $region31: #{tpu_custom_call.1} parent=1 // pred_check_branch
      %427 = sbr.rel (0) target = $region33
    $region32: #{tpu_custom_call.1} parent=1 // pred_region
      %429 = vsyncadd [#allocation4], 0
      %s430 = sshll.u32 [#allocation8], 4
      %s431 = int_to_ptr.vmem [resolvable:$true] %s430
      %s432 = sshll.u32 %s4, 4
      %s433 = int_to_ptr.hbm [resolvable:$true] %s432
      %438 = dma.vmem_to_hbm [thread:$0]  %s431, 256, %s433, [#allocation4], 128, 128, 8
    $region33: #{tpu_custom_call.1} parent=1 // pred_fallthru
      _
    // Predicated region
    $region34: #{tpu_custom_call.1} parent=1 // pred_check
      _
    $region35: #{tpu_custom_call.1} parent=1 // pred_check_branch
      %440 = sbr.rel (0) target = $region37
    $region36: #{tpu_custom_call.1} parent=1 // pred_region
      %442 = dma.done [#allocation4], 256
    $region37: #{tpu_custom_call.1} parent=1 // pred_fallthru
      _
    %443 = vsyncpa [#allocation3], 1
    %444 = vsyncpa [#allocation6], 1
    %445 = vsyncpa [#allocation4], 1

</llo_original>
